<compile_context>
chip_gen: v7x
topology: tpu7x:2x2x1
jax: 0.10.0
libtpu: 0.0.40
codegen_flags: <defaults>
</compile_context>

<pallas_src>
import functools

import jax
import jax.numpy as jnp
from jax.experimental import pallas as pl
from jax.experimental.pallas import tpu as pltpu


def _complementary_loss_kernel(out1_ref, out2_ref, label_ref, loss_ref, *, inv_d: float):
    """Fused: squared diff -> mean over D -> label weight -> sum over batch tile."""
    i = pl.program_id(0)

    @pl.when(i == 0)
    def _():
        loss_ref[...] = jnp.zeros_like(loss_ref)

    diff = out1_ref[...] - out2_ref[...]                              # [Bt, D]  (VPU)
    # mean over the feature (lane) axis, kept as a column
    row_mse = jnp.sum(diff * diff, axis=-1, keepdims=True) * inv_d    # [Bt, 1]
    # label-weighted sum over this batch tile, accumulated across grid steps
    partial = jnp.sum(label_ref[...] * row_mse)                       # scalar
    loss_ref[...] = loss_ref[...] + partial


def complementary_loss(out1, out2, label, *, block_b: int | None = None):
    """Scalar loss = sum_b label[b] * mean_d (out1[b,d] - out2[b,d])**2."""
    B, D = out1.shape
    out1 = out1.astype(jnp.float32)
    out2 = out2.astype(jnp.float32)
    label2d = label.reshape(B, 1).astype(jnp.float32)

    if block_b is None:
        block_b = B
    # TPU tiling rule: a partial batch block must divide B and be a multiple of 8.
    if block_b != B and (B % block_b != 0 or block_b % 8 != 0):
        block_b = B
    grid = (B // block_b,)

    kern = functools.partial(_complementary_loss_kernel, inv_d=1.0 / float(D))
    loss = pl.pallas_call(
        kern,
        out_shape=jax.ShapeDtypeStruct((1, 1), jnp.float32),
        grid=grid,
        in_specs=[
            pl.BlockSpec((block_b, D), lambda i: (i, 0)),
            pl.BlockSpec((block_b, D), lambda i: (i, 0)),
            pl.BlockSpec((block_b, 1), lambda i: (i, 0)),
        ],
        # same output block every step -> scalar accumulator resident in VMEM
        out_specs=pl.BlockSpec((1, 1), lambda i: (0, 0)),
        compiler_params=pltpu.CompilerParams(dimension_semantics=("arbitrary",)),
    )(out1, out2, label2d)
    return loss[0, 0]


if __name__ == "__main__":
    # small shapes consistent with the module: out1/out2 are [batch, hidden]
    B, D = 16, 32
    key = jax.random.PRNGKey(0)
    k1, k2, k3 = jax.random.split(key, 3)
    out1 = jax.random.normal(k1, (B, D), jnp.float32)
    out2 = jax.random.normal(k2, (B, D), jnp.float32)
    label = (jax.random.uniform(k3, (B,)) > 0.5).astype(jnp.float32)

    # block_b=8 exercises the 2-step grid accumulation path
    loss = complementary_loss(out1, out2, label, block_b=8)
    loss = jax.block_until_ready(loss)

    # pure-JAX reference of the PyTorch forward
    ref = jnp.sum(label * jnp.mean((out1 - out2) ** 2, axis=1))

    assert loss.shape == ()
    assert bool(jnp.isfinite(loss))
    assert bool(jnp.allclose(loss, ref, rtol=1e-5, atol=1e-5)), (float(loss), float(ref))
    print("KERNEL_OK")
</pallas_src>

<mosaic_0001>
module attributes {stable_mosaic.version = 11 : i64} {
  func.func @_complementary_loss_kernel(%arg0: i32, %arg1: memref<8x32xf32, #tpu.memory_space<vmem>>, %arg2: memref<8x32xf32, #tpu.memory_space<vmem>>, %arg3: memref<8x1xf32, #tpu.memory_space<vmem>>, %arg4: memref<1x1xf32, #tpu.memory_space<vmem>>) attributes {dimension_semantics = [#tpu.dimension_semantics<arbitrary>], iteration_bounds = array<i64: 2>, scalar_prefetch = 0 : i64, scratch_operands = 0 : i64, tpu.core_type = #tpu.core_type<tc>, window_params = [{transform_indices = @transform_0, window_bounds = array<i64: 8, 32>}, {transform_indices = @transform_1, window_bounds = array<i64: 8, 32>}, {transform_indices = @transform_2, window_bounds = array<i64: 8, 1>}, {pipeline_mode = #tpu.pipeline_mode<synchronous>, transform_indices = @transform_3, window_bounds = array<i64: 1, 1>}]} {
    %c0_i32 = arith.constant 0 : i32
    %0 = arith.cmpi eq, %arg0, %c0_i32 : i32
    %1 = arith.extui %0 : i1 to i32
    %c0_i32_0 = arith.constant 0 : i32
    %2 = arith.cmpi ne, %1, %c0_i32_0 : i32
    scf.if %2 {
      %cst_12 = arith.constant 0.000000e+00 : f32
      %21 = vector.broadcast %cst_12 : f32 to vector<1x1xf32>
      %c0_13 = arith.constant 0 : index
      %c0_14 = arith.constant 0 : index
      %22 = vector.load %arg4[%c0_13, %c0_14] : memref<1x1xf32, #tpu.memory_space<vmem>>, vector<1x1xf32>
      tpu.vector_store %arg4[%c0_13, %c0_14], %21 {strides = array<i32>} : memref<1x1xf32, #tpu.memory_space<vmem>>, vector<1x1xf32>,
    } else {
    }
    %c0 = arith.constant 0 : index
    %c0_1 = arith.constant 0 : index
    %3 = vector.load %arg1[%c0, %c0_1] : memref<8x32xf32, #tpu.memory_space<vmem>>, vector<8x32xf32>
    %c0_2 = arith.constant 0 : index
    %c0_3 = arith.constant 0 : index
    %4 = vector.load %arg2[%c0_2, %c0_3] : memref<8x32xf32, #tpu.memory_space<vmem>>, vector<8x32xf32>
    %5 = arith.subf %3, %4 : vector<8x32xf32>
    %6 = arith.mulf %5, %5 : vector<8x32xf32>
    %cst = arith.constant dense<0.000000e+00> : vector<8xf32>
    %7 = vector.multi_reduction <add>, %6, %cst [1] : vector<8x32xf32> to vector<8xf32>
    %8 = vector.shape_cast %7 : vector<8xf32> to vector<8x1xf32>
    %cst_4 = arith.constant 3.125000e-02 : f32
    %9 = vector.broadcast %cst_4 : f32 to vector<8x1xf32>
    %10 = arith.mulf %8, %9 : vector<8x1xf32>
    %c0_5 = arith.constant 0 : index
    %c0_6 = arith.constant 0 : index
    %11 = vector.load %arg3[%c0_5, %c0_6] : memref<8x1xf32, #tpu.memory_space<vmem>>, vector<8x1xf32>
    %12 = arith.mulf %11, %10 : vector<8x1xf32>
    %13 = vector.shape_cast %12 : vector<8x1xf32> to vector<1x8x1xf32>
    %cst_7 = arith.constant dense<0.000000e+00> : vector<1xf32>
    %14 = vector.multi_reduction <add>, %13, %cst_7 [1, 2] : vector<1x8x1xf32> to vector<1xf32>
    %15 = vector.shape_cast %14 : vector<1xf32> to vector<1x1x1xf32>
    %16 = vector.extract %15[0, 0, 0] : f32 from vector<1x1x1xf32>
    %c0_8 = arith.constant 0 : index
    %c0_9 = arith.constant 0 : index
    %17 = vector.load %arg4[%c0_8, %c0_9] : memref<1x1xf32, #tpu.memory_space<vmem>>, vector<1x1xf32>
    %18 = vector.broadcast %16 : f32 to vector<1x1xf32>
    %19 = arith.addf %17, %18 : vector<1x1xf32>
    %c0_10 = arith.constant 0 : index
    %c0_11 = arith.constant 0 : index
    %20 = vector.load %arg4[%c0_10, %c0_11] : memref<1x1xf32, #tpu.memory_space<vmem>>, vector<1x1xf32>
    tpu.vector_store %arg4[%c0_10, %c0_11], %19 {strides = array<i32>} : memref<1x1xf32, #tpu.memory_space<vmem>>, vector<1x1xf32>,
    return
  }
  func.func @transform_0(%arg0: i32) -> (i32, i32) {
    %c0_i32 = arith.constant 0 : i32
    %c0_i32_0 = arith.constant 0 : i32
    return %arg0, %c0_i32 : i32, i32
  }
  func.func @transform_1(%arg0: i32) -> (i32, i32) {
    %c0_i32 = arith.constant 0 : i32
    %c0_i32_0 = arith.constant 0 : i32
    return %arg0, %c0_i32 : i32, i32
  }
  func.func @transform_2(%arg0: i32) -> (i32, i32) {
    %c0_i32 = arith.constant 0 : i32
    %c0_i32_0 = arith.constant 0 : i32
    return %arg0, %c0_i32 : i32, i32
  }
  func.func @transform_3(%arg0: i32) -> (i32, i32) {
    %c0_i32 = arith.constant 0 : i32
    %c0_i32_0 = arith.constant 0 : i32
    %c0_i32_1 = arith.constant 0 : i32
    return %c0_i32, %c0_i32_0 : i32, i32
  }
}

</mosaic_0001>

<llo_original>
// kernel: tpu_custom_call.1
$region0: #{tpu_custom_call.1}
  #allocation0 [shape = 'u32[]', space=smem, size = 0x4, offset = 0x4, fixed_abs, tag = 'smem constant byte address 0x4 - core index']
  #allocation1 [shape = 'u32[144,128]{1,0:T(1,128)}', space=vmem, size = 0x12000, scoped, tag = 'internal scratch']
  %s0 = inlined_call_operand.vmem [shape: f32[16,32], index: 0, kind: input, shape index: {}]
  %s1 = inlined_call_operand.hbm [shape: f32[16,32], index: 1, kind: input, shape index: {}]
  %s2 = inlined_call_operand.vmem [shape: f32[16,1], index: 2, kind: input, shape index: {}]
  %s3 = inlined_call_operand.hbm [shape: f32[1,1], index: 3, kind: output, shape index: {}]
  %s4 = sld [smem:[#allocation0]]
  $region53: #{tpu_custom_call.1} parent=0
    _
  %s6 = ssub.s32 1, %s4
  %s7 = scalar_select 0, %s6, %s4
  $region1: #{tpu_custom_call.1} parent=0
    #allocation2 [shape = 'u8[8192]{0}', space=vmem, size = 0x2000, scoped, tag = 'input window, operand 1']
    #allocation3 [shape = 's32[2]{0}', space=sflag, size = 0x8, scoped, tag = 'scoped memory for tpu_custom_call.1']
    #allocation4 [shape = 's32[2]{0}', space=sflag, size = 0x8, scoped, tag = 'scoped memory for tpu_custom_call.1']
    #allocation5 [shape = 'u8[512]{0}', space=vmem, size = 0x400, scoped, tag = 'output window, operand 0, single buffered']
    %8 = vsyncpa [#allocation3], 0
    %s9 = scalar_lea.sflag [#allocation3], 1
    %10 = vsyncpa %s9, 0
    %11 = vsyncpa [#allocation4], 0
    loop: start=0, step=1, limit=4
    $region2: #{tpu_custom_call.1} parent=1 // loop_pre_header
      _
    $region3: #{tpu_custom_call.1} parent=1 // loop_header
      %s13 = sphi 0, %s17
      %p14 = scmp.ge.s32.totalorder %s13, 4
      %s23 = sphi 0, %s25
      %s26 = sphi 0, %s23
      %s27 = sphi 0, %s26
      %s43 = sphi 0, %s27
      %s49 = sphi 0, %s51
      %s52 = sphi 0, %s49
      %s53 = sphi 0, %s52
      %s69 = sphi 0, %s53
      %s75 = sphi 0, %s77
      %s78 = sphi 0, %s75
      %s79 = sphi 0, %s78
      %s95 = sphi 0, %s79
      %s99 = sphi 0, %s99
      %s101 = sphi 0, %s99
      %s102 = sphi 0, %s101
      %s116 = sphi 0, %s102
    $region4: #{tpu_custom_call.1} parent=1 // loop_header_branch
      %16 = sbr.rel (%p14) target = $region8
    $region5: #{tpu_custom_call.1} parent=1 // loop_body
      %s18 = ssub.s32 %s13, 1
      %s19 = ssub.s32 %s13, 2
      %s20 = sadd.s32 %s13, 1
      %s21 = ssub.s32 %s13, %s20
      %p22 = scmp.eq.s32.totalorder %s21, 0
      %s24 = sadd.s32 %s23, 1
      %s25 = scalar_select %p22, %s23, %s24
      %p28 = pneg %p22
      %p29 = scmp.eq.s32.totalorder %s13, 1
      %p30 = por %p28, %p29
      %p31 = scmp.ne.s32.totalorder %s23, %s26
      %p32 = scmp.eq.s32.totalorder %s13, 0
      %p33 = por %p31, %p32
      %p34 = scmp.ne.s32.totalorder %s23, %s26
      %p35 = scmp.eq.s32.totalorder %s18, 1
      %p36 = por %p34, %p35
      %p37 = scmp.ne.s32.totalorder %s26, %s27
      %p38 = scmp.eq.s32.totalorder %s18, 0
      %p39 = por %p37, %p38
      %p40 = scmp.ne.s32.totalorder %s26, %s27
      %p41 = scmp.eq.s32.totalorder %s19, 1
      %p42 = por %p40, %p41
      %p44 = scmp.ne.s32.totalorder %s27, %s43
      %p45 = scmp.eq.s32.totalorder %s19, 0
      %p46 = por %p44, %p45
      %s47 = ssub.s32 %s13, %s20
      %p48 = scmp.eq.s32.totalorder %s47, 0
      %s50 = sadd.s32 %s49, 1
      %s51 = scalar_select %p48, %s49, %s50
      %p54 = pneg %p48
      %p55 = scmp.eq.s32.totalorder %s13, 1
      %p56 = por %p54, %p55
      %p57 = scmp.ne.s32.totalorder %s49, %s52
      %p58 = scmp.eq.s32.totalorder %s13, 0
      %p59 = por %p57, %p58
      %p60 = scmp.ne.s32.totalorder %s49, %s52
      %p61 = scmp.eq.s32.totalorder %s18, 1
      %p62 = por %p60, %p61
      %p63 = scmp.ne.s32.totalorder %s52, %s53
      %p64 = scmp.eq.s32.totalorder %s18, 0
      %p65 = por %p63, %p64
      %p66 = scmp.ne.s32.totalorder %s52, %s53
      %p67 = scmp.eq.s32.totalorder %s19, 1
      %p68 = por %p66, %p67
      %p70 = scmp.ne.s32.totalorder %s53, %s69
      %p71 = scmp.eq.s32.totalorder %s19, 0
      %p72 = por %p70, %p71
      %s73 = ssub.s32 %s13, %s20
      %p74 = scmp.eq.s32.totalorder %s73, 0
      %s76 = sadd.s32 %s75, 1
      %s77 = scalar_select %p74, %s75, %s76
      %p80 = pneg %p74
      %p81 = scmp.eq.s32.totalorder %s13, 1
      %p82 = por %p80, %p81
      %p83 = scmp.ne.s32.totalorder %s75, %s78
      %p84 = scmp.eq.s32.totalorder %s13, 0
      %p85 = por %p83, %p84
      %p86 = scmp.ne.s32.totalorder %s75, %s78
      %p87 = scmp.eq.s32.totalorder %s18, 1
      %p88 = por %p86, %p87
      %p89 = scmp.ne.s32.totalorder %s78, %s79
      %p90 = scmp.eq.s32.totalorder %s18, 0
      %p91 = por %p89, %p90
      %p92 = scmp.ne.s32.totalorder %s78, %s79
      %p93 = scmp.eq.s32.totalorder %s19, 1
      %p94 = por %p92, %p93
      %p96 = scmp.ne.s32.totalorder %s79, %s95
      %p97 = scmp.eq.s32.totalorder %s19, 0
      %p98 = por %p96, %p97
      %s100 = sadd.s32 %s99, 1
      %p103 = scmp.eq.s32.totalorder %s13, 1
      %p104 = scmp.ne.s32.totalorder %s99, %s101
      %p105 = scmp.eq.s32.totalorder %s13, 0
      %p106 = por %p104, %p105
      %p107 = scmp.ne.s32.totalorder %s99, %s101
      %p108 = scmp.eq.s32.totalorder %s18, 1
      %p109 = por %p107, %p108
      %p110 = scmp.ne.s32.totalorder %s101, %s102
      %p111 = scmp.eq.s32.totalorder %s18, 0
      %p112 = por %p110, %p111
      %p113 = scmp.ne.s32.totalorder %s101, %s102
      %p114 = scmp.eq.s32.totalorder %s19, 1
      %p115 = por %p113, %p114
      %p117 = scmp.ne.s32.totalorder %s102, %s116
      %p118 = scmp.eq.s32.totalorder %s19, 0
      %p119 = por %p117, %p118
      %p120 = scmp.le.s32.totalorder 1, %s13
      %p121 = scmp.lt.s32.totalorder %s13, 3
      %p122 = pnand %p120, %p121
      %p123 = pneg %p122
      // Predicated region
      $region9: #{tpu_custom_call.1} parent=5 // pred_check
        _
      $region10: #{tpu_custom_call.1} parent=5 // pred_check_branch
        %125 = sbr.rel (%p122) target = $region12
      $region11: #{tpu_custom_call.1} parent=5 // pred_region
        %s126 = ssub.s32 %s13, 1
      $region12: #{tpu_custom_call.1} parent=5 // pred_fallthru
        _
      %p127 = scmp.lt.s32.totalorder %s13, 2
      // Predicated region
      $region13: #{tpu_custom_call.1} parent=5 // pred_check
        %p128 = pneg %p127
      $region14: #{tpu_custom_call.1} parent=5 // pred_check_branch
        %130 = sbr.rel (%p128) target = $region16
      $region15: #{tpu_custom_call.1} parent=5 // pred_region
        // Predicated region
        $region17: #{tpu_custom_call.1} parent=15 // pred_check
          %p131 = pneg %p33
        $region18: #{tpu_custom_call.1} parent=15 // pred_check_branch
          %133 = sbr.rel (%p131) target = $region20
        $region19: #{tpu_custom_call.1} parent=15 // pred_region
          %p134 = scmp.lt.s32.totalorder %s13, 1
          %s135 = scalar_select %p134, %s13, 1
          %s136 = smul.addr %s135, 8
          %s137 = scalar_lea.vmem %s0, %s136
        $region20: #{tpu_custom_call.1} parent=15 // pred_fallthru
          _
        // Predicated region
        $region21: #{tpu_custom_call.1} parent=15 // pred_check
          %p138 = pneg %p59
        $region22: #{tpu_custom_call.1} parent=15 // pred_check_branch
          %140 = sbr.rel (%p138) target = $region24
        $region23: #{tpu_custom_call.1} parent=15 // pred_region
          %s141 = sand.u32 %s49, 1
          %s142 = scalar_lea.sflag [#allocation3], %s141
          %s143 = sand.u32 %s49, 1
          %s144 = smul.addr %s143, 8
          %s145 = scalar_lea.vmem [#allocation2], %s144
          %s147 = ssub.s32 128, 128
          %148 = vsyncadd %s142, %s147
          %s149 = smul.addr %s13, 128
          %s150 = scalar_lea.hbm %s1, %s149
          %s152 = sshll.u32 %s145, 4
          %s153 = int_to_ptr.vmem [resolvable:$true] %s152
          %155 = dma.hbm_to_vmem [thread:$0]  %s150, 128, %s153, %s142
        $region24: #{tpu_custom_call.1} parent=15 // pred_fallthru
          _
        // Predicated region
        $region25: #{tpu_custom_call.1} parent=15 // pred_check
          %p156 = pneg %p85
        $region26: #{tpu_custom_call.1} parent=15 // pred_check_branch
          %158 = sbr.rel (%p156) target = $region28
        $region27: #{tpu_custom_call.1} parent=15 // pred_region
          %p159 = scmp.lt.s32.totalorder %s13, 1
          %s160 = scalar_select %p159, %s13, 1
          %s161 = smul.addr %s160, 8
          %s162 = scalar_lea.vmem %s2, %s161
        $region28: #{tpu_custom_call.1} parent=15 // pred_fallthru
          _
      $region16: #{tpu_custom_call.1} parent=5 // pred_fallthru
        _
      %p163 = scmp.le.s32.totalorder 1, %s13
      %p164 = scmp.lt.s32.totalorder %s13, 3
      %p165 = pnand %p163, %p164
      %p166 = pneg %p165
      // Predicated region
      $region29: #{tpu_custom_call.1} parent=5 // pred_check
        _
      $region30: #{tpu_custom_call.1} parent=5 // pred_check_branch
        %168 = sbr.rel (%p165) target = $region32
      $region31: #{tpu_custom_call.1} parent=5 // pred_region
        %s169 = ssub.s32 %s13, 1
        %s170 = sand.u32 %s52, 1
        %s171 = scalar_lea.sflag [#allocation3], %s170
        %s172 = sand.u32 %s52, 1
        %s173 = smul.addr %s172, 8
        %s174 = scalar_lea.vmem [#allocation2], %s173
        // Predicated region
        $region33: #{tpu_custom_call.1} parent=31 // pred_check
          %p175 = pneg %p65
        $region34: #{tpu_custom_call.1} parent=31 // pred_check_branch
          %177 = sbr.rel (%p175) target = $region36
        $region35: #{tpu_custom_call.1} parent=31 // pred_region
          %178 = dma.done %s171, 128
        $region36: #{tpu_custom_call.1} parent=31 // pred_fallthru
          _
        %p179 = scmp.lt.s32.totalorder %s18, 1
        %s180 = scalar_select %p179, %s18, 1
        %s181 = smul.addr %s180, 8
        %s182 = scalar_lea.vmem %s0, %s181
        %p183 = pneg %p39
        %p184 = pneg %p36
        %s185 = sand.u32 %s52, 1
        %s186 = scalar_lea.sflag [#allocation3], %s185
        %s187 = sand.u32 %s52, 1
        %s188 = smul.addr %s187, 8
        %s189 = scalar_lea.vmem [#allocation2], %s188
        %p190 = pneg %p65
        %p191 = pneg %p62
        %p192 = scmp.lt.s32.totalorder %s18, 1
        %s193 = scalar_select %p192, %s18, 1
        %s194 = smul.addr %s193, 8
        %s195 = scalar_lea.vmem %s2, %s194
        %p196 = pneg %p91
        %p197 = pneg %p88
        %p198 = pneg %p112
        %p199 = pneg %p109
        %p200 = scmp.lt.s32.totalorder %s18, 1
        %s201 = scalar_select %p200, %s18, 1
        %s202 = smul.addr %s201, 8
        %s203 = scalar_lea.vmem %s0, %s202
        %p204 = scmp.lt.s32.totalorder %s18, 1
        %s205 = scalar_select %p204, %s18, 1
        %s206 = smul.addr %s205, 8
        %s207 = scalar_lea.vmem %s2, %s206
        %p208 = scmp.eq.s32.totalorder %s18, 0
        // Predicated region
        $region37: #{tpu_custom_call.1} parent=31 // pred_check
          %p209 = pneg %p208
        $region38: #{tpu_custom_call.1} parent=31 // pred_check_branch
          %211 = sbr.rel (%p209) target = $region40
        $region39: #{tpu_custom_call.1} parent=31 // pred_region
          %vm212 = vcmask 0
          %213 = vst.msk [vmem:[#allocation5] sm:$0x1] %vm212, 0.0
        $region40: #{tpu_custom_call.1} parent=31 // pred_fallthru
          _
        %v214 = vld [vmem:[%s203] sm:$0xff]
        %v215 = vld [vmem:[%s174] sm:$0xff]
        %v216 = vsub.f32 %v214, %v215
        %v217 = vmul.f32 %v216, %v216
        %vm218 = vcmask 261120
        %v219 = vsel %vm218, %v217, 0.0
        %220 = vadd.xlane.f32.xlu0 %v219
        %v221 = vpop.xlane.xlu0 %220
        %v222 = vmul.f32 %v221, 0.03125
        %v223 = vld [vmem:[%s207] sm:$0xff]
        %v224 = vmul.f32 %v223, %v222
        %vm225 = vcmask 7168
        %v226 = vsel %vm225, %v224, 0.0
        %227 = vadd.xlane.f32.xlu0 %v226
        %v228 = vpop.xlane.xlu0 %227
        %v229 = vrot.slane %v228, 4
        %v230 = vadd.f32 %v228, %v229
        %v231 = vrot.slane %v230, 2
        %v232 = vadd.f32 %v230, %v231
        %v233 = vrot.slane %v232, 1
        %v234 = vadd.f32 %v232, %v233
        %s235 = vtos %v234
        %v236 = vld [vmem:[#allocation5] sm:$0x1]
        %v237 = vstv %s235
        %v238 = vadd.f32 %v236, %v237
        %vm239 = vcmask 0
        %240 = vst.msk [vmem:[#allocation5] sm:$0x1] %vm239, %v238
        // Predicated region
        $region41: #{tpu_custom_call.1} parent=31 // pred_check
          %p241 = pneg %p109
        $region42: #{tpu_custom_call.1} parent=31 // pred_check_branch
          %243 = sbr.rel (%p241) target = $region44
        $region43: #{tpu_custom_call.1} parent=31 // pred_region
          %s245 = ssub.s32 16, 16
          %246 = vsyncadd [#allocation4], %s245
          %s248 = sshll.u32 [#allocation5], 4
          %s249 = int_to_ptr.vmem [resolvable:$true] %s248
          %251 = dma.vmem_to_hbm [thread:$0]  %s249, 16, %s3, [#allocation4]
        $region44: #{tpu_custom_call.1} parent=31 // pred_fallthru
          _
        // Predicated region
        $region45: #{tpu_custom_call.1} parent=31 // pred_check
          %p252 = pneg %p109
        $region46: #{tpu_custom_call.1} parent=31 // pred_check_branch
          %254 = sbr.rel (%p252) target = $region48
        $region47: #{tpu_custom_call.1} parent=31 // pred_region
          %255 = dma.done [#allocation4], 16
        $region48: #{tpu_custom_call.1} parent=31 // pred_fallthru
          _
      $region32: #{tpu_custom_call.1} parent=5 // pred_fallthru
        _
      %p256 = scmp.le.s32.totalorder 2, %s13
      // Predicated region
      $region49: #{tpu_custom_call.1} parent=5 // pred_check
        %p257 = pneg %p256
      $region50: #{tpu_custom_call.1} parent=5 // pred_check_branch
        %259 = sbr.rel (%p257) target = $region52
      $region51: #{tpu_custom_call.1} parent=5 // pred_region
        %s260 = ssub.s32 %s13, 2
      $region52: #{tpu_custom_call.1} parent=5 // pred_fallthru
        _
    $region6: #{tpu_custom_call.1} parent=1 // loop_footer
      %s17 = sadd.s32 1, %s13
    $region7: #{tpu_custom_call.1} parent=1 // loop_footer_branch
      %12 = sbr.rel target = $region3
    $region8: #{tpu_custom_call.1} parent=1 // loop_exit
      _
    %261 = vsyncpa [#allocation3], 1
    %s262 = scalar_lea.sflag [#allocation3], 1
    %263 = vsyncpa %s262, 1
    %264 = vsyncpa [#allocation4], 1
    %s265 = scalar_lea.sflag [#allocation4], 1
    %266 = vsyncpa %s265, 1

</llo_original>
